<compile_context>
chip_gen: v6e
topology: v6e:2x2x1
jax: 0.10.0
libtpu: 0.0.40
codegen_flags: <defaults>
</compile_context>

<pallas_src>
import math

import jax
import jax.numpy as jnp
from jax.experimental import pallas as pl
from jax.experimental.pallas import tpu as pltpu

# Max rows of x per grid step.  x and out tiles each lane-pad to ~512 B/row in VMEM,
# so TM=8192 double-buffered is ~16 MiB — inside the default scoped VMEM budget on
# v5e/v6e and within v7x's 64 MiB physical VMEM without raising vmem_limit_bytes.
_TM_MAX = 8192
# Below this batch size a single fused XLA dot+add beats the pallas_call fixed cost.
_SMALL_B_FAST_PATH = 2048


def _cdiv(a, b):
    return -(-a // b)


def _round_up(n, m):
    return ((n + m - 1) // m) * m


def _choose_tm(batch, tm_max):
    """Batch tile: multiple of 8, <= tm_max, rows spread evenly so padding waste
    is bounded (e.g. B=513 does not pad all the way to 1024)."""
    tm_max = max(8, _round_up(min(tm_max, _TM_MAX), 8))
    n_steps = _cdiv(batch, tm_max)
    tm = _round_up(_cdiv(batch, n_steps), 8)
    return min(tm, tm_max)


def _spatial_conv_kernel(x_ref, w_ref, b_ref, o_ref):
    # Hot path: (TM, K) @ (K, OC) on the MXU with f32 accumulation, fused bias add.
    acc = jnp.dot(x_ref[...], w_ref[...], preferred_element_type=jnp.float32)
    o_ref[...] = (acc + b_ref[...]).astype(o_ref.dtype)


def spatial_conv_module(x, weight, bias, *, tm=_TM_MAX, use_bf16=False,
                        force_pallas=False):
    """x: (B, K) float32; weight: (OC, 1, K); bias: (OC,) -> (B, OC) in x.dtype."""
    B, K = x.shape
    OC = weight.shape[0]

    in_dtype = jnp.bfloat16 if use_bf16 else x.dtype
    w2d = weight.reshape(OC, K).T.astype(in_dtype)        # (K, OC), dense lanes
    b2d = bias.astype(jnp.float32).reshape(1, OC)

    # Small-batch fast path: one fused XLA dot+add, no Pallas launch overhead.
    if B <= _SMALL_B_FAST_PATH and not force_pallas:
        y = jnp.dot(x.astype(in_dtype), w2d,
                    preferred_element_type=jnp.float32) + b2d
        return y.astype(x.dtype)

    tm_eff = _choose_tm(B, tm)
    n_steps = _cdiv(B, tm_eff)
    b_rows = n_steps * tm_eff

    x_in = x.astype(in_dtype)
    if b_rows != B:
        x_in = jnp.pad(x_in, ((0, b_rows - B), (0, 0)))

    cost = pl.CostEstimate(
        flops=2 * b_rows * K * OC,
        transcendentals=0,
        bytes_accessed=(x_in.dtype.itemsize * b_rows * K          # x read
                        + w2d.dtype.itemsize * K * OC             # weight
                        + 4 * OC                                  # bias
                        + x.dtype.itemsize * b_rows * OC),        # dense out write
    )

    out = pl.pallas_call(
        _spatial_conv_kernel,
        out_shape=jax.ShapeDtypeStruct((b_rows, OC), x.dtype),
        grid_spec=pltpu.PrefetchScalarGridSpec(
            num_scalar_prefetch=0,
            grid=(n_steps,),
            in_specs=[
                pl.BlockSpec((tm_eff, K), lambda i: (i, 0)),   # x tile (pipelined)
                pl.BlockSpec((K, OC), lambda i: (0, 0)),       # weight (resident)
                pl.BlockSpec((1, OC), lambda i: (0, 0)),       # bias (resident)
            ],
            out_specs=pl.BlockSpec((tm_eff, OC), lambda i: (i, 0)),
        ),
        compiler_params=pltpu.CompilerParams(
            dimension_semantics=("parallel",)),
        cost_estimate=cost,
    )(x_in, w2d, b2d)

    return out[:B]


def init_params(key, in_channels=1, out_channels=20, kernel_size=10):
    # PyTorch Conv1d default init: U(-1/sqrt(fan_in), 1/sqrt(fan_in)).
    fan_in = in_channels * kernel_size
    bound = 1.0 / math.sqrt(fan_in)
    k_w, k_b = jax.random.split(key)
    weight = jax.random.uniform(
        k_w, (out_channels, in_channels, kernel_size),
        minval=-bound, maxval=bound, dtype=jnp.float32)
    bias = jax.random.uniform(
        k_b, (out_channels,), minval=-bound, maxval=bound, dtype=jnp.float32)
    return weight, bias


if __name__ == "__main__":
    key = jax.random.PRNGKey(0)
    k_x, k_p = jax.random.split(key)

    B, K, OC = 8, 10, 20
    x = jax.random.normal(k_x, (B, K), dtype=jnp.float32)
    weight, bias = init_params(k_p, in_channels=1, out_channels=OC, kernel_size=K)
    y_ref = x @ weight.reshape(OC, K).T + bias

    # Exercise the Pallas kernel (force past the small-B XLA fast path).
    y = jax.block_until_ready(spatial_conv_module(x, weight, bias, force_pallas=True))
    assert y.shape == (B, OC)
    assert jnp.allclose(y, y_ref, atol=1e-5), "pallas mismatch vs reference"

    # Small-B fast path (plain XLA fused dot+add).
    y_fast = jax.block_until_ready(spatial_conv_module(x, weight, bias))
    assert jnp.allclose(y_fast, y_ref, atol=1e-5), "fast-path mismatch vs reference"

    # Non-multiple-of-8 batch, multi-step grid (exercises row padding + pipelining).
    x2 = jax.random.normal(jax.random.PRNGKey(1), (37, K), dtype=jnp.float32)
    y2 = jax.block_until_ready(
        spatial_conv_module(x2, weight, bias, tm=16, force_pallas=True))
    y2_ref = x2 @ weight.reshape(OC, K).T + bias
    assert y2.shape == (37, OC)
    assert jnp.allclose(y2, y2_ref, atol=1e-5), "padded-batch mismatch vs reference"

    # bf16-input path (f32 accumulate); looser tolerance is expected and documented.
    y_bf16 = jax.block_until_ready(
        spatial_conv_module(x, weight, bias, use_bf16=True, force_pallas=True))
    assert jnp.allclose(y_bf16, y_ref, atol=2e-2), "bf16 path mismatch vs reference"

    print("KERNEL_OK")
</pallas_src>

<mosaic_0001>
module attributes {stable_mosaic.version = 11 : i64} {
  func.func @_spatial_conv_kernel(%arg0: i32, %arg1: memref<8x10xf32, #tpu.memory_space<vmem>>, %arg2: memref<10x20xf32, #tpu.memory_space<vmem>>, %arg3: memref<1x20xf32, #tpu.memory_space<vmem>>, %arg4: memref<8x20xf32, #tpu.memory_space<vmem>>) attributes {dimension_semantics = [#tpu.dimension_semantics<parallel>], iteration_bounds = array<i64: 1>, scalar_prefetch = 0 : i64, scratch_operands = 0 : i64, tpu.core_type = #tpu.core_type<tc>, window_params = [{transform_indices = @transform_0, window_bounds = array<i64: 8, 10>}, {pipeline_mode = #tpu.pipeline_mode<synchronous>, transform_indices = @transform_1, window_bounds = array<i64: 10, 20>}, {pipeline_mode = #tpu.pipeline_mode<synchronous>, transform_indices = @transform_2, window_bounds = array<i64: 1, 20>}, {transform_indices = @transform_3, window_bounds = array<i64: 8, 20>}]} {
    %c0 = arith.constant 0 : index
    %c0_0 = arith.constant 0 : index
    %0 = vector.load %arg1[%c0, %c0_0] : memref<8x10xf32, #tpu.memory_space<vmem>>, vector<8x10xf32>
    %c0_1 = arith.constant 0 : index
    %c0_2 = arith.constant 0 : index
    %1 = vector.load %arg2[%c0_1, %c0_2] : memref<10x20xf32, #tpu.memory_space<vmem>>, vector<10x20xf32>
    %cst = arith.constant dense<0.000000e+00> : vector<8x20xf32>
    %2 = tpu.matmul %0, %1, %cst {dimension_numbers = #tpu.dot_dimension_numbers<[1], [0], [0], [1], [0, 0, 1, 1], [], []>} : vector<8x10xf32>, vector<10x20xf32>, vector<8x20xf32> -> vector<8x20xf32>
    %c0_3 = arith.constant 0 : index
    %c0_4 = arith.constant 0 : index
    %3 = vector.load %arg3[%c0_3, %c0_4] : memref<1x20xf32, #tpu.memory_space<vmem>>, vector<1x20xf32>
    %4 = vector.broadcast %3 : vector<1x20xf32> to vector<8x20xf32>
    %5 = arith.addf %2, %4 : vector<8x20xf32>
    %c0_5 = arith.constant 0 : index
    %c0_6 = arith.constant 0 : index
    %6 = vector.load %arg4[%c0_5, %c0_6] : memref<8x20xf32, #tpu.memory_space<vmem>>, vector<8x20xf32>
    tpu.vector_store %arg4[%c0_5, %c0_6], %5 {strides = array<i32>} : memref<8x20xf32, #tpu.memory_space<vmem>>, vector<8x20xf32>,
    return
  }
  func.func @transform_0(%arg0: i32) -> (i32, i32) {
    %c0_i32 = arith.constant 0 : i32
    %c0_i32_0 = arith.constant 0 : i32
    return %arg0, %c0_i32 : i32, i32
  }
  func.func @transform_1(%arg0: i32) -> (i32, i32) {
    %c0_i32 = arith.constant 0 : i32
    %c0_i32_0 = arith.constant 0 : i32
    %c0_i32_1 = arith.constant 0 : i32
    return %c0_i32, %c0_i32_0 : i32, i32
  }
  func.func @transform_2(%arg0: i32) -> (i32, i32) {
    %c0_i32 = arith.constant 0 : i32
    %c0_i32_0 = arith.constant 0 : i32
    %c0_i32_1 = arith.constant 0 : i32
    return %c0_i32, %c0_i32_0 : i32, i32
  }
  func.func @transform_3(%arg0: i32) -> (i32, i32) {
    %c0_i32 = arith.constant 0 : i32
    %c0_i32_0 = arith.constant 0 : i32
    return %arg0, %c0_i32 : i32, i32
  }
}

</mosaic_0001>

<llo_original>
// kernel: tpu_custom_call.1
$region0: #{tpu_custom_call.1}
  #allocation0 [shape = 'u32[]', space=smem, size = 0x4, offset = 0x4, fixed_abs, tag = 'smem constant byte address 0x4 - core index']
  #allocation1 [shape = 'u32[144,128]{1,0:T(1,128)}', space=vmem, size = 0x12000, scoped, tag = 'internal scratch']
  %s0 = inlined_call_operand.hbm [shape: f32[8,10], index: 0, kind: input, shape index: {}]
  %s1 = inlined_call_operand.hbm [shape: f32[10,20], index: 1, kind: input, shape index: {}]
  %s2 = inlined_call_operand.vmem [shape: f32[1,20], index: 2, kind: input, shape index: {}]
  %s3 = inlined_call_operand.hbm [shape: f32[8,20], index: 3, kind: output, shape index: {}]
  %s4 = sld [smem:[#allocation0]]
  $region30: #{tpu_custom_call.1} parent=0
    _
  %s6 = ssub.s32 1, %s4
  %s7 = scalar_select 0, %s6, %s4
  $region1: #{tpu_custom_call.1} parent=0
    #allocation2 [shape = 'u8[4096]{0}', space=vmem, size = 0x1000, scoped, tag = 'input window, operand 0, single buffered']
    #allocation3 [shape = 's32[1]{0}', space=sflag, size = 0x4, scoped, tag = 'scoped memory for tpu_custom_call.1']
    #allocation4 [shape = 's32[1]{0}', space=sflag, size = 0x4, scoped, tag = 'scoped memory for tpu_custom_call.1']
    #allocation5 [shape = 'u8[8192]{0}', space=vmem, size = 0x2000, scoped, tag = 'input window, operand 1, single buffered']
    #allocation6 [shape = 's32[1]{0}', space=sflag, size = 0x4, scoped, tag = 'scoped memory for tpu_custom_call.1']
    #allocation7 [shape = 'u8[4096]{0}', space=vmem, size = 0x1000, scoped, tag = 'output window, operand 0, single buffered']
    %8 = vsyncpa [#allocation3], 0
    %9 = vsyncpa [#allocation6], 0
    %10 = vsyncpa [#allocation4], 0
    // Predicated region
    $region2: #{tpu_custom_call.1} parent=1 // pred_check
      _
    $region3: #{tpu_custom_call.1} parent=1 // pred_check_branch
      %12 = sbr.rel (0) target = $region5
    $region4: #{tpu_custom_call.1} parent=1 // pred_region
      %s14 = ssub.s32 128, 128
      %15 = vsyncadd [#allocation3], %s14
      %s17 = sshll.u32 [#allocation2], 4
      %s18 = int_to_ptr.vmem [resolvable:$true] %s17
      %20 = dma.hbm_to_vmem [thread:$0]  %s0, 128, %s18, [#allocation3]
    $region5: #{tpu_custom_call.1} parent=1 // pred_fallthru
      _
    // Predicated region
    $region6: #{tpu_custom_call.1} parent=1 // pred_check
      _
    $region7: #{tpu_custom_call.1} parent=1 // pred_check_branch
      %22 = sbr.rel (0) target = $region9
    $region8: #{tpu_custom_call.1} parent=1 // pred_region
      %s24 = ssub.s32 256, 256
      %25 = vsyncadd [#allocation6], %s24
      %s26 = sshll.u32 [#allocation5], 4
      %s27 = int_to_ptr.vmem [resolvable:$true] %s26
      %32 = dma.hbm_to_vmem [thread:$0]  %s1, 256, %s27, [#allocation6], 128, 128, 8
    $region9: #{tpu_custom_call.1} parent=1 // pred_fallthru
      _
    // Predicated region
    $region10: #{tpu_custom_call.1} parent=1 // pred_check
      _
    $region11: #{tpu_custom_call.1} parent=1 // pred_check_branch
      %34 = sbr.rel (0) target = $region13
    $region12: #{tpu_custom_call.1} parent=1 // pred_region
      _
    $region13: #{tpu_custom_call.1} parent=1 // pred_fallthru
      _
    // Predicated region
    $region14: #{tpu_custom_call.1} parent=1 // pred_check
      _
    $region15: #{tpu_custom_call.1} parent=1 // pred_check_branch
      %36 = sbr.rel (0) target = $region17
    $region16: #{tpu_custom_call.1} parent=1 // pred_region
      %37 = dma.done [#allocation3], 128
    $region17: #{tpu_custom_call.1} parent=1 // pred_fallthru
      _
    // Predicated region
    $region18: #{tpu_custom_call.1} parent=1 // pred_check
      _
    $region19: #{tpu_custom_call.1} parent=1 // pred_check_branch
      %39 = sbr.rel (0) target = $region21
    $region20: #{tpu_custom_call.1} parent=1 // pred_region
      %40 = dma.done [#allocation6], 256
    $region21: #{tpu_custom_call.1} parent=1 // pred_fallthru
      _
    %v41 = vld [vmem:[#allocation2] sm:$0xff]
    %v42 = vld [vmem:[#allocation5] sm:$0xff]
    %v43 = vld [vmem:[#allocation5 + $0x8] sm:$0x3]
    %v44 = vld [vmem:[%s2] sm:$0x1]
    %v46 = vlaneseq
    %v47 = vshrl.u32 %v46, 7
    %v48 = vsub.s32 0, %v47
    %v49 = vrot.slane %v44, %v48
    %vm51 = vcmask 80896
    %v53 = vsel %vm51, %v41, 0
    %vm55 = vcmask 1041408
    %v57 = vsel %vm55, %v43, 0
    %59 = vmatprep.subr.mxu0 0.0
    %60 = vmatpush1.msra.mxu0 0.0
    %61 = vmatprep.subr.mxu0 0.0
    %62 = vmatpush1.msra.mxu0 0.0
    %63 = vmatprep.subr.mxu0 0.0
    %64 = vmatpush1.msra.mxu0 0.0
    %65 = vmatprep.subr.mxu0 0.0
    %66 = vmatpush1.msra.mxu0 0.0
    %67 = vmatprep.subr.mxu0 0.0
    %68 = vmatpush1.msra.mxu0 0.0
    %69 = vmatprep.subr.mxu0 0.0
    %70 = vmatpush1.msra.mxu0 0.0
    %71 = vmatprep.subr.mxu0 0.0
    %72 = vmatpush1.msra.mxu0 0.0
    %73 = vmatprep.subr.mxu0 0.0
    %74 = vmatpush1.msra.mxu0 0.0
    %75 = vmatprep.subr.mxu0 0.0
    %76 = vmatpush1.msra.mxu0 0.0
    %77 = vmatprep.subr.mxu0 0.0
    %78 = vmatpush1.msra.mxu0 0.0
    %79 = vmatprep.subr.mxu0 0.0
    %80 = vmatpush1.msra.mxu0 0.0
    %81 = vmatprep.subr.mxu0 0.0
    %82 = vmatpush1.msra.mxu0 0.0
    %83 = vmatprep.subr.mxu0 0.0
    %84 = vmatpush1.msra.mxu0 0.0
    %85 = vmatprep.subr.mxu0 0.0
    %86 = vmatpush1.msra.mxu0 0.0
    %87 = vmatprep.subr.mxu0 0.0
    %88 = vmatpush1.msra.mxu0 %v57
    %89 = vmatprep.subr.mxu0 0.0
    %90 = vmatpush1.msra.mxu0 %v42
    %91 = vmatprep.subr.mxu0 0.0
    %92 = vmatpush2.msra.mxu0 0.0
    %93 = vmatprep.subr.mxu0 0.0
    %94 = vmatpush2.msra.mxu0 0.0
    %95 = vmatprep.subr.mxu0 0.0
    %96 = vmatpush2.msra.mxu0 0.0
    %97 = vmatprep.subr.mxu0 0.0
    %98 = vmatpush2.msra.mxu0 0.0
    %99 = vmatprep.subr.mxu0 0.0
    %100 = vmatpush2.msra.mxu0 0.0
    %101 = vmatprep.subr.mxu0 0.0
    %102 = vmatpush2.msra.mxu0 0.0
    %103 = vmatprep.subr.mxu0 0.0
    %104 = vmatpush2.msra.mxu0 0.0
    %105 = vmatprep.subr.mxu0 0.0
    %106 = vmatpush2.msra.mxu0 0.0
    %107 = vmatprep.subr.mxu0 0.0
    %108 = vmatpush2.msra.mxu0 0.0
    %109 = vmatprep.subr.mxu0 0.0
    %110 = vmatpush2.msra.mxu0 0.0
    %111 = vmatprep.subr.mxu0 0.0
    %112 = vmatpush2.msra.mxu0 0.0
    %113 = vmatprep.subr.mxu0 0.0
    %114 = vmatpush2.msra.mxu0 0.0
    %115 = vmatprep.subr.mxu0 0.0
    %116 = vmatpush2.msra.mxu0 0.0
    %117 = vmatprep.subr.mxu0 0.0
    %118 = vmatpush2.msra.mxu0 0.0
    %119 = vmatprep.subr.mxu0 0.0
    %120 = vmatpush2.msra.mxu0 0.0
    %121 = vmatprep.subr.mxu0 0.0
    %122 = vmatpush2.msra.mxu0 0.0
    %123 = vmatprep.mubr.f32.mxu0 0.0
    %124 = vmatmul.mubr.f32.gmra.mxu0 %v53
    %v125 = vpop.f32.mrf.mxu0
    %v126 = vadd.f32 %v49, %v125
    %v127 = vpop.f32.mrf.mxu0
    %128 = vdwg.mxu0
    %vm129 = vcmask 162816
    %130 = vst.msk [vmem:[#allocation7] sm:$0xff] %vm129, %v126
    // Predicated region
    $region22: #{tpu_custom_call.1} parent=1 // pred_check
      _
    $region23: #{tpu_custom_call.1} parent=1 // pred_check_branch
      %132 = sbr.rel (0) target = $region25
    $region24: #{tpu_custom_call.1} parent=1 // pred_region
      %s134 = ssub.s32 128, 128
      %135 = vsyncadd [#allocation4], %s134
      %s137 = sshll.u32 [#allocation7], 4
      %s138 = int_to_ptr.vmem [resolvable:$true] %s137
      %140 = dma.vmem_to_hbm [thread:$0]  %s138, 128, %s3, [#allocation4]
    $region25: #{tpu_custom_call.1} parent=1 // pred_fallthru
      _
    // Predicated region
    $region26: #{tpu_custom_call.1} parent=1 // pred_check
      _
    $region27: #{tpu_custom_call.1} parent=1 // pred_check_branch
      %142 = sbr.rel (0) target = $region29
    $region28: #{tpu_custom_call.1} parent=1 // pred_region
      %143 = dma.done [#allocation4], 128
    $region29: #{tpu_custom_call.1} parent=1 // pred_fallthru
      _
    %144 = vsyncpa [#allocation3], 1
    %145 = vsyncpa [#allocation6], 1
    %146 = vsyncpa [#allocation4], 1

</llo_original>
